<compile_context>
chip_gen: v6e
topology: v6e:2x2x1
jax: 0.10.0
libtpu: 0.0.40
codegen_flags: <defaults>
</compile_context>

<pallas_src>
import functools

import jax
import jax.numpy as jnp
from jax.experimental import pallas as pl
from jax.experimental.pallas import tpu as pltpu

_LANE = 128      # vreg lane width: last-dim alignment target
_SUBLANE = 8     # vreg sublane count: batch-tile alignment target


def _round_up(x, m):
    return (x + m - 1) // m * m


# --------------------------- hardware introspection ---------------------------

def _tpu_generation():
    try:
        kind = jax.devices()[0].device_kind.lower()
    except Exception:
        return 0
    for g in (7, 6, 5, 4):
        if f"v{g}" in kind or f"tpu{g}" in kind:
            return g
    return 0


def _vmem_limit_bytes(gen):
    cap = None
    try:
        cap = int(pltpu.get_tpu_info().vmem_capacity_bytes)
    except Exception:
        cap = None
    if cap is None:
        cap = (128 << 20) if gen in (5, 6) else (64 << 20)
    # ~85% of physical VMEM: uses the full 128 MiB parts (v5e/v6e) while leaving
    # compiler-scratch headroom on v7x's 64 MiB/TC.
    return int(cap * 0.85)


def _choose_block_b(batch, gen):
    # v5e: 1 vst slot / no bf16 VPU -> smaller tiles; v6e: big tiles amortize
    # per-step overhead; v7x: 2 TCs share the parallel axis -> want >=4 steps.
    cap = {5: 256, 6: 1024, 7: 512}.get(gen, 512)
    min_steps = 4 if gen >= 7 else 2
    bb = cap
    while bb > _SUBLANE and bb * min_steps > batch:
        bb //= 2
    return max(_SUBLANE, _round_up(bb, _SUBLANE))


def _divisor_tile(dim, target, unit):
    """Largest multiple of `unit` <= target that divides `dim` (dim % unit == 0)."""
    t = max(unit, min(dim, (target // unit) * unit))
    while dim % t:
        t -= unit
    return t


# ------------------------------ parameter prep --------------------------------

def prepare_mlp_params(weights, param_dtype=None):
    """One-time prep of PyTorch-layout (out_d, in_d) Linear weights.

    Transposes to MXU-native (in_d, out_d) and zero-pads every feature dim to a
    multiple of 128 lanes (exact: zero weight rows/cols -> zero activations,
    SiLU(0)=0, zeros don't change the L2 norm).  Do this once at parameter-prep
    time so the forward path does no weight reshuffling.
    """
    dims = [int(weights[0].shape[1])] + [int(w.shape[0]) for w in weights]
    pdims = [_round_up(d, _LANE) for d in dims]
    wts = []
    for i, w in enumerate(weights):
        assert w.shape == (dims[i + 1], dims[i]), "unexpected weight shape"
        wt = jnp.transpose(w)
        if param_dtype is not None:
            wt = wt.astype(param_dtype)
        wt = jnp.pad(wt, ((0, pdims[i] - dims[i]),
                          (0, pdims[i + 1] - dims[i + 1])))
        wts.append(wt)
    return {"weights": tuple(wts), "dims": tuple(dims), "pdims": tuple(pdims),
            "param_dtype": param_dtype}


# --------------------------------- kernels -------------------------------------

def _mlp_fused_kernel(x_ref, *rest, num_layers, normalize):
    """Fused MLP: all linear layers + SiLU (+ optional L2 norm) in one kernel."""
    w_refs = rest[:num_layers]
    o_ref = rest[num_layers]

    h = x_ref[...]                               # (block_b, D), native dtype
    for i in range(num_layers):
        w = w_refs[i][...]                       # (in_d, out_d), native dtype
        # MXU matmul with f32 accumulation; operands stay in native dtype.
        h = jnp.dot(h, w, preferred_element_type=jnp.float32)
        if i != num_layers - 1:
            h = h * jax.nn.sigmoid(h)            # SiLU in f32 (sigmoid on EUP)
            h = h.astype(w_refs[i + 1].dtype)    # native-dtype feed to next matmul
    if normalize:
        inv = jax.lax.rsqrt(jnp.sum(h * h, axis=-1, keepdims=True) + 1e-12)
        h = h * inv
    o_ref[...] = h.astype(o_ref.dtype)


def _matmul_act_kernel(x_ref, w_ref, o_ref, acc_ref, *, apply_silu):
    """One layer of the streaming fallback: tiled matmul + optional SiLU."""
    k = pl.program_id(2)

    @pl.when(k == 0)
    def _():
        acc_ref[...] = jnp.zeros_like(acc_ref)

    acc_ref[...] += jnp.dot(x_ref[...], w_ref[...],
                            preferred_element_type=jnp.float32)

    @pl.when(k == pl.num_programs(2) - 1)
    def _():
        h = acc_ref[...]
        if apply_silu:
            h = h * jax.nn.sigmoid(h)
        o_ref[...] = h.astype(o_ref.dtype)


def _l2norm_kernel(x_ref, o_ref):
    h = x_ref[...].astype(jnp.float32)
    inv = jax.lax.rsqrt(jnp.sum(h * h, axis=-1, keepdims=True) + 1e-12)
    o_ref[...] = (h * inv).astype(o_ref.dtype)


# -------------------------------- forward --------------------------------------

def _mlp_forward_streaming(xp, wts, normalize, out_dtype, tm, vmem_limit):
    """Fallback when the full weight set does not fit VMEM: per-layer tiled
    matmuls (weights streamed in N/K tiles) + a small L2-norm kernel."""
    B_pad = xp.shape[0]
    h = xp
    for i, wt in enumerate(wts):
        K, N = wt.shape
        tk = _divisor_tile(K, 512, _LANE)
        tn = _divisor_tile(N, 512, _LANE)
        last = (i == len(wts) - 1)
        layer_out_dtype = out_dtype if last else wt.dtype
        kernel = functools.partial(_matmul_act_kernel, apply_silu=not last)
        h = pl.pallas_call(
            kernel,
            out_shape=jax.ShapeDtypeStruct((B_pad, N), layer_out_dtype),
            grid=(B_pad // tm, N // tn, K // tk),
            in_specs=[pl.BlockSpec((tm, tk), lambda i_, j_, k_: (i_, k_)),
                      pl.BlockSpec((tk, tn), lambda i_, j_, k_: (k_, j_))],
            out_specs=pl.BlockSpec((tm, tn), lambda i_, j_, k_: (i_, j_)),
            scratch_shapes=[pltpu.VMEM((tm, tn), jnp.float32)],
            compiler_params=pltpu.CompilerParams(
                dimension_semantics=("parallel", "parallel", "arbitrary"),
                vmem_limit_bytes=vmem_limit),
        )(h, wt)
    if normalize:
        N = h.shape[1]
        h = pl.pallas_call(
            _l2norm_kernel,
            out_shape=jax.ShapeDtypeStruct((B_pad, N), out_dtype),
            grid=(B_pad // tm,),
            in_specs=[pl.BlockSpec((tm, N), lambda i_: (i_, 0))],
            out_specs=pl.BlockSpec((tm, N), lambda i_: (i_, 0)),
            compiler_params=pltpu.CompilerParams(
                dimension_semantics=("parallel",),
                vmem_limit_bytes=vmem_limit),
        )(h)
    return h


def mlp_forward(x, params, normalize=False, block_b=None, trim_output=True,
                force_streaming=False):
    """x: (B, input_dim). params: prepare_mlp_params(...) output, or a list of
    PyTorch-layout (out_d, in_d) weights (prepared on the fly)."""
    if not isinstance(params, dict):
        params = prepare_mlp_params(params)
    wts = params["weights"]
    dims = params["dims"]
    pdims = params["pdims"]

    B, D = x.shape
    assert D == dims[0], f"Invalid input dim: expected {dims[0]}, found {D}"
    num_layers = len(wts)
    out_dim = dims[-1]
    out_dtype = x.dtype
    if params["param_dtype"] is not None:
        x = x.astype(params["param_dtype"])

    gen = _tpu_generation()
    vmem_limit = _vmem_limit_bytes(gen)

    if block_b is None:
        block_b = _choose_block_b(B, gen)
    block_b = max(_SUBLANE, _round_up(block_b, _SUBLANE))

    x_itemsize = jnp.dtype(x.dtype).itemsize
    out_itemsize = jnp.dtype(out_dtype).itemsize
    w_bytes = sum(int(w.size) * w.dtype.itemsize for w in wts)
    max_feat = max(pdims)

    def _vmem_need(bb):
        return (2 * bb * pdims[0] * x_itemsize       # double-buffered x tiles
                + w_bytes                             # single-buffered weights
                + 2 * bb * pdims[-1] * out_itemsize   # double-buffered out tiles
                + 4 * bb * max_feat * 4)              # f32 temporaries headroom

    # Shrink the batch tile until the fused kernel fits the VMEM budget.
    while block_b > _SUBLANE and _vmem_need(block_b) > vmem_limit:
        block_b = max(_SUBLANE, (block_b // 2 // _SUBLANE) * _SUBLANE)
    fused_fits = (not force_streaming) and (_vmem_need(block_b) <= vmem_limit)

    B_pad = _round_up(B, block_b)
    xp = jnp.pad(x, ((0, B_pad - B), (0, pdims[0] - D)))

    if not fused_fits:
        y = _mlp_forward_streaming(xp, wts, normalize, out_dtype,
                                   block_b, vmem_limit)
    else:
        grid = (B_pad // block_b,)

        in_specs = [pl.BlockSpec((block_b, pdims[0]), lambda i: (i, 0))]
        for wt in wts:
            # Grid-invariant full-array block: stays resident in VMEM across all
            # batch tiles; single-buffer it (no useless second copy).
            in_specs.append(pl.BlockSpec(wt.shape, lambda i: (0, 0),
                                         pipeline_mode=pl.Buffered(1)))
        out_spec = pl.BlockSpec((block_b, pdims[-1]), lambda i: (i, 0))

        # Cost estimate on the real (unpadded) I/O + transferred weight bytes.
        flops = 2 * B * sum(pdims[i] * pdims[i + 1] for i in range(num_layers))
        transcendentals = B * sum(pdims[1:-1])
        bytes_accessed = (B * D * x_itemsize + w_bytes
                          + B * out_dim * out_itemsize)

        kernel = functools.partial(
            _mlp_fused_kernel, num_layers=num_layers, normalize=normalize)

        y = pl.pallas_call(
            kernel,
            out_shape=jax.ShapeDtypeStruct((B_pad, pdims[-1]), out_dtype),
            grid=grid,
            in_specs=in_specs,
            out_specs=out_spec,
            compiler_params=pltpu.CompilerParams(
                dimension_semantics=("parallel",),
                vmem_limit_bytes=vmem_limit),
            cost_estimate=pl.CostEstimate(
                flops=int(flops),
                transcendentals=int(transcendentals),
                bytes_accessed=int(bytes_accessed)),
        )(xp, *wts)

    if trim_output:
        return y[:B, :out_dim]
    return y


# ----------------------------- test scaffolding --------------------------------

def _init_weights(key, dims):
    """Deterministic init matching nn.Linear's U(-1/sqrt(in_d), 1/sqrt(in_d))."""
    weights = []
    for in_d, out_d in zip(dims[:-1], dims[1:]):
        key, sub = jax.random.split(key)
        bound = 1.0 / (in_d ** 0.5)
        weights.append(
            jax.random.uniform(sub, (out_d, in_d), jnp.float32,
                               minval=-bound, maxval=bound))
    return weights


def _reference(x, weights, normalize):
    h = x.astype(jnp.float32)
    for i, w in enumerate(weights):
        h = h @ w.T
        if i != len(weights) - 1:
            h = h * jax.nn.sigmoid(h)
    if normalize:
        h = h / jnp.sqrt(jnp.sum(h * h, axis=-1, keepdims=True) + 1e-12)
    return h.astype(x.dtype)


if __name__ == "__main__":
    # Small shapes consistent with the module's (B, D) forward contract.
    B = 8
    input_dim = 32
    hidden_dims = [64, 48]
    out_dim = 16
    # TODO(synk): dropout != 0.0 (training-mode Bernoulli masking) not implemented;
    # the module default dropout=0.0 is an identity.

    key = jax.random.PRNGKey(0)
    kx, kw = jax.random.split(key)
    x = jax.random.normal(kx, (B, input_dim), jnp.float32)
    weights = _init_weights(kw, [input_dim] + hidden_dims + [out_dim])
    params = prepare_mlp_params(weights)   # one-time transpose + pad

    ok = True
    for normalize in (False, True):                 # both module variants
        y_ref = _reference(x, weights, normalize)
        for force_streaming in (False, True):       # fused path + fallback path
            y = jax.block_until_ready(
                mlp_forward(x, params, normalize=normalize,
                            force_streaming=force_streaming))
            assert y.shape == (B, out_dim)
            ok = ok and bool(jnp.allclose(y, y_ref, atol=1e-5, rtol=1e-5))
    assert ok, "mismatch vs reference"

    print("KERNEL_OK")
</pallas_src>

<mosaic_0001>
module attributes {stable_mosaic.version = 11 : i64} {
  func.func @_mlp_fused_kernel(%arg0: i32, %arg1: memref<8x128xf32, #tpu.memory_space<vmem>>, %arg2: memref<128x128xf32, #tpu.memory_space<vmem>>, %arg3: memref<128x128xf32, #tpu.memory_space<vmem>>, %arg4: memref<128x128xf32, #tpu.memory_space<vmem>>, %arg5: memref<8x128xf32, #tpu.memory_space<vmem>>) attributes {dimension_semantics = [#tpu.dimension_semantics<parallel>], iteration_bounds = array<i64: 1>, scalar_prefetch = 0 : i64, scratch_operands = 0 : i64, tpu.core_type = #tpu.core_type<tc>, window_params = [{transform_indices = @transform_0, window_bounds = array<i64: 8, 128>}, {pipeline_mode = #tpu.pipeline_mode<synchronous>, transform_indices = @transform_1, window_bounds = array<i64: 128, 128>}, {pipeline_mode = #tpu.pipeline_mode<synchronous>, transform_indices = @transform_2, window_bounds = array<i64: 128, 128>}, {pipeline_mode = #tpu.pipeline_mode<synchronous>, transform_indices = @transform_3, window_bounds = array<i64: 128, 128>}, {transform_indices = @transform_4, window_bounds = array<i64: 8, 128>}]} {
    %c0 = arith.constant 0 : index
    %c0_0 = arith.constant 0 : index
    %0 = vector.load %arg1[%c0, %c0_0] : memref<8x128xf32, #tpu.memory_space<vmem>>, vector<8x128xf32>
    %c0_1 = arith.constant 0 : index
    %c0_2 = arith.constant 0 : index
    %1 = vector.load %arg2[%c0_1, %c0_2] : memref<128x128xf32, #tpu.memory_space<vmem>>, vector<128x128xf32>
    %cst = arith.constant dense<0.000000e+00> : vector<8x128xf32>
    %2 = tpu.matmul %0, %1, %cst {dimension_numbers = #tpu.dot_dimension_numbers<[1], [0], [0], [1], [0, 0, 1, 1], [], []>} : vector<8x128xf32>, vector<128x128xf32>, vector<8x128xf32> -> vector<8x128xf32>
    %3 = arith.negf %2 : vector<8x128xf32>
    %4 = math.exp %3 : vector<8x128xf32>
    %cst_3 = arith.constant 1.000000e+00 : f32
    %5 = vector.broadcast %cst_3 : f32 to vector<8x128xf32>
    %6 = arith.addf %5, %4 : vector<8x128xf32>
    %7 = arith.divf %5, %6 : vector<8x128xf32>
    %8 = arith.mulf %2, %7 : vector<8x128xf32>
    %c0_4 = arith.constant 0 : index
    %c0_5 = arith.constant 0 : index
    %9 = vector.load %arg3[%c0_4, %c0_5] : memref<128x128xf32, #tpu.memory_space<vmem>>, vector<128x128xf32>
    %cst_6 = arith.constant dense<0.000000e+00> : vector<8x128xf32>
    %10 = tpu.matmul %8, %9, %cst_6 {dimension_numbers = #tpu.dot_dimension_numbers<[1], [0], [0], [1], [0, 0, 1, 1], [], []>} : vector<8x128xf32>, vector<128x128xf32>, vector<8x128xf32> -> vector<8x128xf32>
    %11 = arith.negf %10 : vector<8x128xf32>
    %12 = math.exp %11 : vector<8x128xf32>
    %cst_7 = arith.constant 1.000000e+00 : f32
    %13 = vector.broadcast %cst_7 : f32 to vector<8x128xf32>
    %14 = arith.addf %13, %12 : vector<8x128xf32>
    %15 = arith.divf %13, %14 : vector<8x128xf32>
    %16 = arith.mulf %10, %15 : vector<8x128xf32>
    %c0_8 = arith.constant 0 : index
    %c0_9 = arith.constant 0 : index
    %17 = vector.load %arg4[%c0_8, %c0_9] : memref<128x128xf32, #tpu.memory_space<vmem>>, vector<128x128xf32>
    %cst_10 = arith.constant dense<0.000000e+00> : vector<8x128xf32>
    %18 = tpu.matmul %16, %17, %cst_10 {dimension_numbers = #tpu.dot_dimension_numbers<[1], [0], [0], [1], [0, 0, 1, 1], [], []>} : vector<8x128xf32>, vector<128x128xf32>, vector<8x128xf32> -> vector<8x128xf32>
    %c0_11 = arith.constant 0 : index
    %c0_12 = arith.constant 0 : index
    %19 = vector.load %arg5[%c0_11, %c0_12] : memref<8x128xf32, #tpu.memory_space<vmem>>, vector<8x128xf32>
    tpu.vector_store %arg5[%c0_11, %c0_12], %18 {strides = array<i32>} : memref<8x128xf32, #tpu.memory_space<vmem>>, vector<8x128xf32>,
    return
  }
  func.func @transform_0(%arg0: i32) -> (i32, i32) {
    %c0_i32 = arith.constant 0 : i32
    %c0_i32_0 = arith.constant 0 : i32
    return %arg0, %c0_i32 : i32, i32
  }
  func.func @transform_1(%arg0: i32) -> (i32, i32) {
    %c0_i32 = arith.constant 0 : i32
    %c0_i32_0 = arith.constant 0 : i32
    %c0_i32_1 = arith.constant 0 : i32
    return %c0_i32, %c0_i32_0 : i32, i32
  }
  func.func @transform_2(%arg0: i32) -> (i32, i32) {
    %c0_i32 = arith.constant 0 : i32
    %c0_i32_0 = arith.constant 0 : i32
    %c0_i32_1 = arith.constant 0 : i32
    return %c0_i32, %c0_i32_0 : i32, i32
  }
  func.func @transform_3(%arg0: i32) -> (i32, i32) {
    %c0_i32 = arith.constant 0 : i32
    %c0_i32_0 = arith.constant 0 : i32
    %c0_i32_1 = arith.constant 0 : i32
    return %c0_i32, %c0_i32_0 : i32, i32
  }
  func.func @transform_4(%arg0: i32) -> (i32, i32) {
    %c0_i32 = arith.constant 0 : i32
    %c0_i32_0 = arith.constant 0 : i32
    return %arg0, %c0_i32 : i32, i32
  }
}

</mosaic_0001>

<llo_original>
// kernel: tpu_custom_call.1
$region0: #{tpu_custom_call.1}
  #allocation0 [shape = 'u32[]', space=smem, size = 0x4, offset = 0x4, fixed_abs, tag = 'smem constant byte address 0x4 - core index']
  #allocation1 [shape = 'u32[144,128]{1,0:T(1,128)}', space=vmem, size = 0x12000, scoped, tag = 'internal scratch']
  %s0 = inlined_call_operand.hbm [shape: f32[8,128], index: 0, kind: input, shape index: {}]
  %s1 = inlined_call_operand.hbm [shape: f32[128,128], index: 1, kind: input, shape index: {}]
  %s2 = inlined_call_operand.hbm [shape: f32[128,128], index: 2, kind: input, shape index: {}]
  %s3 = inlined_call_operand.hbm [shape: f32[128,128], index: 3, kind: input, shape index: {}]
  %s4 = inlined_call_operand.hbm [shape: f32[8,128], index: 4, kind: output, shape index: {}]
  %s5 = sld [smem:[#allocation0]]
  $region42: #{tpu_custom_call.1} parent=0
    _
  %s7 = ssub.s32 1, %s5
  %s8 = scalar_select 0, %s7, %s5
  $region1: #{tpu_custom_call.1} parent=0
    #allocation2 [shape = 'u8[4096]{0}', space=vmem, size = 0x1000, scoped, tag = 'input window, operand 0, single buffered']
    #allocation3 [shape = 's32[1]{0}', space=sflag, size = 0x4, scoped, tag = 'scoped memory for tpu_custom_call.1']
    #allocation4 [shape = 's32[1]{0}', space=sflag, size = 0x4, scoped, tag = 'scoped memory for tpu_custom_call.1']
    #allocation5 [shape = 'u8[65536]{0}', space=vmem, size = 0x10000, scoped, tag = 'input window, operand 1, single buffered']
    #allocation6 [shape = 's32[1]{0}', space=sflag, size = 0x4, scoped, tag = 'scoped memory for tpu_custom_call.1']
    #allocation7 [shape = 'u8[65536]{0}', space=vmem, size = 0x10000, scoped, tag = 'input window, operand 2, single buffered']
    #allocation8 [shape = 'u8[65536]{0}', space=vmem, size = 0x10000, scoped, tag = 'input window, operand 3, single buffered']
    #allocation9 [shape = 's32[1]{0}', space=sflag, size = 0x4, scoped, tag = 'scoped memory for tpu_custom_call.1']
    #allocation10 [shape = 'u8[4096]{0}', space=vmem, size = 0x1000, scoped, tag = 'output window, operand 0, single buffered']
    %9 = vsyncpa [#allocation3], 0
    %10 = vsyncpa [#allocation6], 0
    %11 = vsyncpa [#allocation9], 0
    %12 = vsyncpa [#allocation4], 0
    // Predicated region
    $region2: #{tpu_custom_call.1} parent=1 // pred_check
      _
    $region3: #{tpu_custom_call.1} parent=1 // pred_check_branch
      %14 = sbr.rel (0) target = $region5
    $region4: #{tpu_custom_call.1} parent=1 // pred_region
      %s16 = ssub.s32 128, 128
      %17 = vsyncadd [#allocation3], %s16
      %s19 = sshll.u32 [#allocation2], 4
      %s20 = int_to_ptr.vmem [resolvable:$true] %s19
      %22 = dma.hbm_to_vmem [thread:$0]  %s0, 128, %s20, [#allocation3]
    $region5: #{tpu_custom_call.1} parent=1 // pred_fallthru
      _
    // Predicated region
    $region6: #{tpu_custom_call.1} parent=1 // pred_check
      _
    $region7: #{tpu_custom_call.1} parent=1 // pred_check_branch
      %24 = sbr.rel (0) target = $region9
    $region8: #{tpu_custom_call.1} parent=1 // pred_region
      %s26 = ssub.s32 2048, 2048
      %27 = vsyncadd [#allocation6], %s26
      %s28 = sshll.u32 [#allocation5], 4
      %s29 = int_to_ptr.vmem [resolvable:$true] %s28
      %34 = dma.hbm_to_vmem [thread:$0]  %s1, 2048, %s29, [#allocation6], 128, 128, 8
    $region9: #{tpu_custom_call.1} parent=1 // pred_fallthru
      _
    // Predicated region
    $region10: #{tpu_custom_call.1} parent=1 // pred_check
      _
    $region11: #{tpu_custom_call.1} parent=1 // pred_check_branch
      %36 = sbr.rel (0) target = $region13
    $region12: #{tpu_custom_call.1} parent=1 // pred_region
      %s38 = ssub.s32 2048, 2048
      %39 = vsyncadd [#allocation6], %s38
      %s40 = sshll.u32 [#allocation7], 4
      %s41 = int_to_ptr.vmem [resolvable:$true] %s40
      %46 = dma.hbm_to_vmem [thread:$0]  %s2, 2048, %s41, [#allocation6], 128, 128, 8
    $region13: #{tpu_custom_call.1} parent=1 // pred_fallthru
      _
    // Predicated region
    $region14: #{tpu_custom_call.1} parent=1 // pred_check
      _
    $region15: #{tpu_custom_call.1} parent=1 // pred_check_branch
      %48 = sbr.rel (0) target = $region17
    $region16: #{tpu_custom_call.1} parent=1 // pred_region
      %s50 = ssub.s32 2048, 2048
      %51 = vsyncadd [#allocation9], %s50
      %s52 = sshll.u32 [#allocation8], 4
      %s53 = int_to_ptr.vmem [resolvable:$true] %s52
      %58 = dma.hbm_to_vmem [thread:$0]  %s3, 2048, %s53, [#allocation9], 128, 128, 8
    $region17: #{tpu_custom_call.1} parent=1 // pred_fallthru
      _
    // Predicated region
    $region18: #{tpu_custom_call.1} parent=1 // pred_check
      _
    $region19: #{tpu_custom_call.1} parent=1 // pred_check_branch
      %60 = sbr.rel (0) target = $region21
    $region20: #{tpu_custom_call.1} parent=1 // pred_region
      %61 = dma.done [#allocation3], 128
    $region21: #{tpu_custom_call.1} parent=1 // pred_fallthru
      _
    // Predicated region
    $region22: #{tpu_custom_call.1} parent=1 // pred_check
      _
    $region23: #{tpu_custom_call.1} parent=1 // pred_check_branch
      %63 = sbr.rel (0) target = $region25
    $region24: #{tpu_custom_call.1} parent=1 // pred_region
      %64 = dma.done [#allocation6], 2048
    $region25: #{tpu_custom_call.1} parent=1 // pred_fallthru
      _
    // Predicated region
    $region26: #{tpu_custom_call.1} parent=1 // pred_check
      _
    $region27: #{tpu_custom_call.1} parent=1 // pred_check_branch
      %66 = sbr.rel (0) target = $region29
    $region28: #{tpu_custom_call.1} parent=1 // pred_region
      %67 = dma.done [#allocation6], 2048
    $region29: #{tpu_custom_call.1} parent=1 // pred_fallthru
      _
    // Predicated region
    $region30: #{tpu_custom_call.1} parent=1 // pred_check
      _
    $region31: #{tpu_custom_call.1} parent=1 // pred_check_branch
      %69 = sbr.rel (0) target = $region33
    $region32: #{tpu_custom_call.1} parent=1 // pred_region
      %70 = dma.done [#allocation9], 2048
    $region33: #{tpu_custom_call.1} parent=1 // pred_fallthru
      _
    %v71 = vld [vmem:[#allocation2] sm:$0xff]
    %v72 = vld [vmem:[#allocation5] sm:$0xff]
    %v73 = vld [vmem:[#allocation5 + $0x8] sm:$0xff]
    %v74 = vld [vmem:[#allocation5 + $0x10] sm:$0xff]
    %v75 = vld [vmem:[#allocation5 + $0x18] sm:$0xff]
    %v76 = vld [vmem:[#allocation5 + $0x20] sm:$0xff]
    %v77 = vld [vmem:[#allocation5 + $0x28] sm:$0xff]
    %v78 = vld [vmem:[#allocation5 + $0x30] sm:$0xff]
    %v79 = vld [vmem:[#allocation5 + $0x38] sm:$0xff]
    %v80 = vld [vmem:[#allocation5 + $0x40] sm:$0xff]
    %v81 = vld [vmem:[#allocation5 + $0x48] sm:$0xff]
    %v82 = vld [vmem:[#allocation5 + $0x50] sm:$0xff]
    %v83 = vld [vmem:[#allocation5 + $0x58] sm:$0xff]
    %v84 = vld [vmem:[#allocation5 + $0x60] sm:$0xff]
    %v85 = vld [vmem:[#allocation5 + $0x68] sm:$0xff]
    %v86 = vld [vmem:[#allocation5 + $0x70] sm:$0xff]
    %v87 = vld [vmem:[#allocation5 + $0x78] sm:$0xff]
    %88 = vmatprep.subr.mxu0 0.0
    %89 = vmatpush1.msra.mxu0 %v87
    %90 = vmatprep.subr.mxu0 0.0
    %91 = vmatpush1.msra.mxu0 %v86
    %92 = vmatprep.subr.mxu0 0.0
    %93 = vmatpush1.msra.mxu0 %v85
    %94 = vmatprep.subr.mxu0 0.0
    %95 = vmatpush1.msra.mxu0 %v84
    %96 = vmatprep.subr.mxu0 0.0
    %97 = vmatpush1.msra.mxu0 %v83
    %98 = vmatprep.subr.mxu0 0.0
    %99 = vmatpush1.msra.mxu0 %v82
    %100 = vmatprep.subr.mxu0 0.0
    %101 = vmatpush1.msra.mxu0 %v81
    %102 = vmatprep.subr.mxu0 0.0
    %103 = vmatpush1.msra.mxu0 %v80
    %104 = vmatprep.subr.mxu0 0.0
    %105 = vmatpush1.msra.mxu0 %v79
    %106 = vmatprep.subr.mxu0 0.0
    %107 = vmatpush1.msra.mxu0 %v78
    %108 = vmatprep.subr.mxu0 0.0
    %109 = vmatpush1.msra.mxu0 %v77
    %110 = vmatprep.subr.mxu0 0.0
    %111 = vmatpush1.msra.mxu0 %v76
    %112 = vmatprep.subr.mxu0 0.0
    %113 = vmatpush1.msra.mxu0 %v75
    %114 = vmatprep.subr.mxu0 0.0
    %115 = vmatpush1.msra.mxu0 %v74
    %116 = vmatprep.subr.mxu0 0.0
    %117 = vmatpush1.msra.mxu0 %v73
    %118 = vmatprep.subr.mxu0 0.0
    %119 = vmatpush1.msra.mxu0 %v72
    %120 = vmatprep.subr.mxu0 0.0
    %121 = vmatpush2.msra.mxu0 0.0
    %122 = vmatprep.subr.mxu0 0.0
    %123 = vmatpush2.msra.mxu0 0.0
    %124 = vmatprep.subr.mxu0 0.0
    %125 = vmatpush2.msra.mxu0 0.0
    %126 = vmatprep.subr.mxu0 0.0
    %127 = vmatpush2.msra.mxu0 0.0
    %128 = vmatprep.subr.mxu0 0.0
    %129 = vmatpush2.msra.mxu0 0.0
    %130 = vmatprep.subr.mxu0 0.0
    %131 = vmatpush2.msra.mxu0 0.0
    %132 = vmatprep.subr.mxu0 0.0
    %133 = vmatpush2.msra.mxu0 0.0
    %134 = vmatprep.subr.mxu0 0.0
    %135 = vmatpush2.msra.mxu0 0.0
    %136 = vmatprep.subr.mxu0 0.0
    %137 = vmatpush2.msra.mxu0 0.0
    %138 = vmatprep.subr.mxu0 0.0
    %139 = vmatpush2.msra.mxu0 0.0
    %140 = vmatprep.subr.mxu0 0.0
    %141 = vmatpush2.msra.mxu0 0.0
    %142 = vmatprep.subr.mxu0 0.0
    %143 = vmatpush2.msra.mxu0 0.0
    %144 = vmatprep.subr.mxu0 0.0
    %145 = vmatpush2.msra.mxu0 0.0
    %146 = vmatprep.subr.mxu0 0.0
    %147 = vmatpush2.msra.mxu0 0.0
    %148 = vmatprep.subr.mxu0 0.0
    %149 = vmatpush2.msra.mxu0 0.0
    %150 = vmatprep.subr.mxu0 0.0
    %151 = vmatpush2.msra.mxu0 0.0
    %152 = vmatprep.mubr.f32.mxu0 0.0
    %153 = vmatmul.mubr.f32.gmra.mxu0 %v71
    %v154 = vpop.f32.mrf.mxu0
    %v155 = vadd.f32 0.0, %v154
    %v156 = vpop.f32.mrf.mxu0
    %157 = vdwg.mxu0
    %v158 = vxor.u32 %v155, 2147483648
    %v159 = vmul.f32 %v158, 1.442695
    %v160 = vpow.pop %v159
    %v161 = vadd.f32 %v160, 1.0
    %v162 = vrcp.pop %v161
    %v163 = vmul.f32 1.0, %v162
    %v164 = vmul.f32 %v155, %v163
    %v165 = vld [vmem:[#allocation7] sm:$0xff]
    %v166 = vld [vmem:[#allocation7 + $0x8] sm:$0xff]
    %v167 = vld [vmem:[#allocation7 + $0x10] sm:$0xff]
    %v168 = vld [vmem:[#allocation7 + $0x18] sm:$0xff]
    %v169 = vld [vmem:[#allocation7 + $0x20] sm:$0xff]
    %v170 = vld [vmem:[#allocation7 + $0x28] sm:$0xff]
    %v171 = vld [vmem:[#allocation7 + $0x30] sm:$0xff]
    %v172 = vld [vmem:[#allocation7 + $0x38] sm:$0xff]
    %v173 = vld [vmem:[#allocation7 + $0x40] sm:$0xff]
    %v174 = vld [vmem:[#allocation7 + $0x48] sm:$0xff]
    %v175 = vld [vmem:[#allocation7 + $0x50] sm:$0xff]
    %v176 = vld [vmem:[#allocation7 + $0x58] sm:$0xff]
    %v177 = vld [vmem:[#allocation7 + $0x60] sm:$0xff]
    %v178 = vld [vmem:[#allocation7 + $0x68] sm:$0xff]
    %v179 = vld [vmem:[#allocation7 + $0x70] sm:$0xff]
    %v180 = vld [vmem:[#allocation7 + $0x78] sm:$0xff]
    %181 = vmatprep.subr.mxu0 0.0
    %182 = vmatpush1.msra.mxu0 %v180
    %183 = vmatprep.subr.mxu0 0.0
    %184 = vmatpush1.msra.mxu0 %v179
    %185 = vmatprep.subr.mxu0 0.0
    %186 = vmatpush1.msra.mxu0 %v178
    %187 = vmatprep.subr.mxu0 0.0
    %188 = vmatpush1.msra.mxu0 %v177
    %189 = vmatprep.subr.mxu0 0.0
    %190 = vmatpush1.msra.mxu0 %v176
    %191 = vmatprep.subr.mxu0 0.0
    %192 = vmatpush1.msra.mxu0 %v175
    %193 = vmatprep.subr.mxu0 0.0
    %194 = vmatpush1.msra.mxu0 %v174
    %195 = vmatprep.subr.mxu0 0.0
    %196 = vmatpush1.msra.mxu0 %v173
    %197 = vmatprep.subr.mxu0 0.0
    %198 = vmatpush1.msra.mxu0 %v172
    %199 = vmatprep.subr.mxu0 0.0
    %200 = vmatpush1.msra.mxu0 %v171
    %201 = vmatprep.subr.mxu0 0.0
    %202 = vmatpush1.msra.mxu0 %v170
    %203 = vmatprep.subr.mxu0 0.0
    %204 = vmatpush1.msra.mxu0 %v169
    %205 = vmatprep.subr.mxu0 0.0
    %206 = vmatpush1.msra.mxu0 %v168
    %207 = vmatprep.subr.mxu0 0.0
    %208 = vmatpush1.msra.mxu0 %v167
    %209 = vmatprep.subr.mxu0 0.0
    %210 = vmatpush1.msra.mxu0 %v166
    %211 = vmatprep.subr.mxu0 0.0
    %212 = vmatpush1.msra.mxu0 %v165
    %213 = vmatprep.subr.mxu0 0.0
    %214 = vmatpush2.msra.mxu0 0.0
    %215 = vmatprep.subr.mxu0 0.0
    %216 = vmatpush2.msra.mxu0 0.0
    %217 = vmatprep.subr.mxu0 0.0
    %218 = vmatpush2.msra.mxu0 0.0
    %219 = vmatprep.subr.mxu0 0.0
    %220 = vmatpush2.msra.mxu0 0.0
    %221 = vmatprep.subr.mxu0 0.0
    %222 = vmatpush2.msra.mxu0 0.0
    %223 = vmatprep.subr.mxu0 0.0
    %224 = vmatpush2.msra.mxu0 0.0
    %225 = vmatprep.subr.mxu0 0.0
    %226 = vmatpush2.msra.mxu0 0.0
    %227 = vmatprep.subr.mxu0 0.0
    %228 = vmatpush2.msra.mxu0 0.0
    %229 = vmatprep.subr.mxu0 0.0
    %230 = vmatpush2.msra.mxu0 0.0
    %231 = vmatprep.subr.mxu0 0.0
    %232 = vmatpush2.msra.mxu0 0.0
    %233 = vmatprep.subr.mxu0 0.0
    %234 = vmatpush2.msra.mxu0 0.0
    %235 = vmatprep.subr.mxu0 0.0
    %236 = vmatpush2.msra.mxu0 0.0
    %237 = vmatprep.subr.mxu0 0.0
    %238 = vmatpush2.msra.mxu0 0.0
    %239 = vmatprep.subr.mxu0 0.0
    %240 = vmatpush2.msra.mxu0 0.0
    %241 = vmatprep.subr.mxu0 0.0
    %242 = vmatpush2.msra.mxu0 0.0
    %243 = vmatprep.subr.mxu0 0.0
    %244 = vmatpush2.msra.mxu0 0.0
    %245 = vmatprep.mubr.f32.mxu0 0.0
    %246 = vmatmul.mubr.f32.gmra.mxu0 %v164
    %v247 = vpop.f32.mrf.mxu0
    %v248 = vadd.f32 0.0, %v247
    %v249 = vpop.f32.mrf.mxu0
    %250 = vdwg.mxu0
    %v251 = vxor.u32 %v248, 2147483648
    %v252 = vmul.f32 %v251, 1.442695
    %v253 = vpow.pop %v252
    %v254 = vadd.f32 %v253, 1.0
    %v255 = vrcp.pop %v254
    %v256 = vmul.f32 1.0, %v255
    %v257 = vmul.f32 %v248, %v256
    %v258 = vld [vmem:[#allocation8] sm:$0xff]
    %v259 = vld [vmem:[#allocation8 + $0x8] sm:$0xff]
    %v260 = vld [vmem:[#allocation8 + $0x10] sm:$0xff]
    %v261 = vld [vmem:[#allocation8 + $0x18] sm:$0xff]
    %v262 = vld [vmem:[#allocation8 + $0x20] sm:$0xff]
    %v263 = vld [vmem:[#allocation8 + $0x28] sm:$0xff]
    %v264 = vld [vmem:[#allocation8 + $0x30] sm:$0xff]
    %v265 = vld [vmem:[#allocation8 + $0x38] sm:$0xff]
    %v266 = vld [vmem:[#allocation8 + $0x40] sm:$0xff]
    %v267 = vld [vmem:[#allocation8 + $0x48] sm:$0xff]
    %v268 = vld [vmem:[#allocation8 + $0x50] sm:$0xff]
    %v269 = vld [vmem:[#allocation8 + $0x58] sm:$0xff]
    %v270 = vld [vmem:[#allocation8 + $0x60] sm:$0xff]
    %v271 = vld [vmem:[#allocation8 + $0x68] sm:$0xff]
    %v272 = vld [vmem:[#allocation8 + $0x70] sm:$0xff]
    %v273 = vld [vmem:[#allocation8 + $0x78] sm:$0xff]
    %274 = vmatprep.subr.mxu0 0.0
    %275 = vmatpush1.msra.mxu0 %v273
    %276 = vmatprep.subr.mxu0 0.0
    %277 = vmatpush1.msra.mxu0 %v272
    %278 = vmatprep.subr.mxu0 0.0
    %279 = vmatpush1.msra.mxu0 %v271
    %280 = vmatprep.subr.mxu0 0.0
    %281 = vmatpush1.msra.mxu0 %v270
    %282 = vmatprep.subr.mxu0 0.0
    %283 = vmatpush1.msra.mxu0 %v269
    %284 = vmatprep.subr.mxu0 0.0
    %285 = vmatpush1.msra.mxu0 %v268
    %286 = vmatprep.subr.mxu0 0.0
    %287 = vmatpush1.msra.mxu0 %v267
    %288 = vmatprep.subr.mxu0 0.0
    %289 = vmatpush1.msra.mxu0 %v266
    %290 = vmatprep.subr.mxu0 0.0
    %291 = vmatpush1.msra.mxu0 %v265
    %292 = vmatprep.subr.mxu0 0.0
    %293 = vmatpush1.msra.mxu0 %v264
    %294 = vmatprep.subr.mxu0 0.0
    %295 = vmatpush1.msra.mxu0 %v263
    %296 = vmatprep.subr.mxu0 0.0
    %297 = vmatpush1.msra.mxu0 %v262
    %298 = vmatprep.subr.mxu0 0.0
    %299 = vmatpush1.msra.mxu0 %v261
    %300 = vmatprep.subr.mxu0 0.0
    %301 = vmatpush1.msra.mxu0 %v260
    %302 = vmatprep.subr.mxu0 0.0
    %303 = vmatpush1.msra.mxu0 %v259
    %304 = vmatprep.subr.mxu0 0.0
    %305 = vmatpush1.msra.mxu0 %v258
    %306 = vmatprep.subr.mxu0 0.0
    %307 = vmatpush2.msra.mxu0 0.0
    %308 = vmatprep.subr.mxu0 0.0
    %309 = vmatpush2.msra.mxu0 0.0
    %310 = vmatprep.subr.mxu0 0.0
    %311 = vmatpush2.msra.mxu0 0.0
    %312 = vmatprep.subr.mxu0 0.0
    %313 = vmatpush2.msra.mxu0 0.0
    %314 = vmatprep.subr.mxu0 0.0
    %315 = vmatpush2.msra.mxu0 0.0
    %316 = vmatprep.subr.mxu0 0.0
    %317 = vmatpush2.msra.mxu0 0.0
    %318 = vmatprep.subr.mxu0 0.0
    %319 = vmatpush2.msra.mxu0 0.0
    %320 = vmatprep.subr.mxu0 0.0
    %321 = vmatpush2.msra.mxu0 0.0
    %322 = vmatprep.subr.mxu0 0.0
    %323 = vmatpush2.msra.mxu0 0.0
    %324 = vmatprep.subr.mxu0 0.0
    %325 = vmatpush2.msra.mxu0 0.0
    %326 = vmatprep.subr.mxu0 0.0
    %327 = vmatpush2.msra.mxu0 0.0
    %328 = vmatprep.subr.mxu0 0.0
    %329 = vmatpush2.msra.mxu0 0.0
    %330 = vmatprep.subr.mxu0 0.0
    %331 = vmatpush2.msra.mxu0 0.0
    %332 = vmatprep.subr.mxu0 0.0
    %333 = vmatpush2.msra.mxu0 0.0
    %334 = vmatprep.subr.mxu0 0.0
    %335 = vmatpush2.msra.mxu0 0.0
    %336 = vmatprep.subr.mxu0 0.0
    %337 = vmatpush2.msra.mxu0 0.0
    %338 = vmatprep.mubr.f32.mxu0 0.0
    %339 = vmatmul.mubr.f32.gmra.mxu0 %v257
    %v340 = vpop.f32.mrf.mxu0
    %v341 = vadd.f32 0.0, %v340
    %v342 = vpop.f32.mrf.mxu0
    %343 = vdwg.mxu0
    %344 = vst [vmem:[#allocation10] sm:$0xff] %v341
    // Predicated region
    $region34: #{tpu_custom_call.1} parent=1 // pred_check
      _
    $region35: #{tpu_custom_call.1} parent=1 // pred_check_branch
      %346 = sbr.rel (0) target = $region37
    $region36: #{tpu_custom_call.1} parent=1 // pred_region
      %s348 = ssub.s32 128, 128
      %349 = vsyncadd [#allocation4], %s348
      %s351 = sshll.u32 [#allocation10], 4
      %s352 = int_to_ptr.vmem [resolvable:$true] %s351
      %354 = dma.vmem_to_hbm [thread:$0]  %s352, 128, %s4, [#allocation4]
    $region37: #{tpu_custom_call.1} parent=1 // pred_fallthru
      _
    // Predicated region
    $region38: #{tpu_custom_call.1} parent=1 // pred_check
      _
    $region39: #{tpu_custom_call.1} parent=1 // pred_check_branch
      %356 = sbr.rel (0) target = $region41
    $region40: #{tpu_custom_call.1} parent=1 // pred_region
      %357 = dma.done [#allocation4], 128
    $region41: #{tpu_custom_call.1} parent=1 // pred_fallthru
      _
    %358 = vsyncpa [#allocation3], 1
    %359 = vsyncpa [#allocation6], 1
    %360 = vsyncpa [#allocation9], 1
    %361 = vsyncpa [#allocation4], 1

</llo_original>
